<compile_context>
chip_gen: v7x
topology: tpu7x:2x2x1
jax: 0.10.0
libtpu: 0.0.40
codegen_flags: <defaults>
</compile_context>

<pallas_src>
import jax
import jax.numpy as jnp
from jax.experimental import pallas as pl
from jax.experimental.pallas import tpu as pltpu

LN_EPS = 1e-5  # torch.nn.LayerNorm default


def _round_up(x, m):
    return ((x + m - 1) // m) * m


def _cdiv(a, b):
    return (a + b - 1) // b


# --------------------------------------------------------------------------- #
# Kernel
# --------------------------------------------------------------------------- #
def _make_kernel(true_h, padded_h):
    def kernel(x_ref, w1_ref, b1_ref, gamma_ref, beta_ref, w2_ref, b2_ref, o_ref):
        # x_ref: (TM, Dp) f32; w1_ref: (Dp, Hp) bf16; b1/gamma/beta: (1, Hp) f32;
        # w2_ref: (Hp, Dp) bf16; b2_ref: (1, Dp) f32; o_ref: (TM, Dp).
        x = x_ref[...]                                      # residual kept in f32

        # Linear 1 on the MXU: bf16 operands, f32 accumulation; bias + ReLU in f32.
        h = jnp.dot(x.astype(jnp.bfloat16), w1_ref[...],
                    preferred_element_type=jnp.float32) + b1_ref[...]
        h = jnp.maximum(h, 0.0)                             # padded lanes stay exactly 0

        # LayerNorm over the TRUE hidden width (two-pass variance, masked tail).
        inv_h = jnp.float32(1.0 / true_h)
        mean = jnp.sum(h, axis=-1, keepdims=True) * inv_h   # zero padded lanes -> exact sum
        centered = h - mean
        if padded_h != true_h:
            lane = jax.lax.broadcasted_iota(jnp.int32, (1, padded_h), 1)
            centered = jnp.where(lane < true_h, centered, 0.0)
        var = jnp.sum(centered * centered, axis=-1, keepdims=True) * inv_h
        scale = gamma_ref[...] * jax.lax.rsqrt(var + LN_EPS)        # (TM, Hp)
        hn = (centered * scale + beta_ref[...]).astype(jnp.bfloat16)  # bf16 directly

        # Linear 2 on the MXU + bias + residual in f32.
        y = jnp.dot(hn, w2_ref[...], preferred_element_type=jnp.float32) + b2_ref[...]
        o_ref[...] = (x + y).astype(o_ref.dtype)

    return kernel


# --------------------------------------------------------------------------- #
# One-time parameter preparation (bf16 convert + lane padding of D and H)
# --------------------------------------------------------------------------- #
def prepare_params(params):
    D, H = params["w1"].shape
    Dp, Hp = _round_up(D, 128), _round_up(H, 128)

    w1 = params["w1"].astype(jnp.bfloat16)                  # (D, H)
    w2 = params["w2"].astype(jnp.bfloat16)                  # (H, D)
    b1 = params["b1"].reshape(1, H).astype(jnp.float32)
    gamma = params["gamma"].reshape(1, H).astype(jnp.float32)
    beta = params["beta"].reshape(1, H).astype(jnp.float32)
    b2 = params["b2"].reshape(1, D).astype(jnp.float32)

    if Dp != D:
        w1 = jnp.pad(w1, ((0, Dp - D), (0, 0)))             # zero rows: no effect
        w2 = jnp.pad(w2, ((0, 0), (0, Dp - D)))             # zero cols: zero output lanes
        b2 = jnp.pad(b2, ((0, 0), (0, Dp - D)))
    if Hp != H:
        w1 = jnp.pad(w1, ((0, 0), (0, Hp - H)))             # padded h lanes = 0
        w2 = jnp.pad(w2, ((0, Hp - H), (0, 0)))             # padded rows contribute 0
        b1 = jnp.pad(b1, ((0, 0), (0, Hp - H)))
        gamma = jnp.pad(gamma, ((0, 0), (0, Hp - H)))       # zero gamma -> hn padded = 0
        beta = jnp.pad(beta, ((0, 0), (0, Hp - H)))

    return {"w1": w1, "b1": b1, "gamma": gamma, "beta": beta, "w2": w2, "b2": b2,
            "D": D, "H": H, "Dp": Dp, "Hp": Hp}


# --------------------------------------------------------------------------- #
# Sizing: VMEM limit + row tile
# --------------------------------------------------------------------------- #
def _vmem_limit_bytes():
    try:
        cap = int(pltpu.get_tpu_info().vmem_capacity_bytes)   # 128 MiB v5e/v6e, 64 MiB/TC v7x
    except Exception:
        cap = 64 * 1024 * 1024                                # conservative fallback
    # Leave headroom for compiler-internal scratch; never request more than 112 MiB.
    return min(int(cap * 0.85), 112 * 1024 * 1024)


def _choose_tile(n_rows, d_pad, h_pad, tile_rows, vmem_limit):
    # Grid-invariant operands are double-buffered by the pipeline (bf16 weights + small f32).
    bytes_resident = 2 * (2 * d_pad * h_pad * 2) + 2 * (3 * h_pad + d_pad) * 4

    def activation_bytes(t):
        io = 2 * 2 * t * d_pad * 4                       # x + out tiles, double-buffered f32
        work = t * h_pad * (4 + 2) + t * d_pad * 4       # h f32 + hn bf16 + y f32
        return io + work

    if bytes_resident + activation_bytes(8) > vmem_limit:
        # TODO(synk): H-tiled streaming path needed for these shapes (see header).
        raise NotImplementedError(
            "resident weights + minimal tiles exceed the VMEM budget; "
            "H-tiled streaming path not implemented")

    tile = max(8, _round_up(min(tile_rows, max(n_rows, 1)), 8))
    while tile > 8 and bytes_resident + activation_bytes(tile) > vmem_limit:
        tile = max(8, _round_up(tile // 2, 8))

    # v7x megacore: keep the (parallel) row grid at >= 2 steps when there is enough work.
    if n_rows > 8 and _cdiv(n_rows, tile) < 2:
        tile = max(8, _round_up(_cdiv(n_rows, 2), 8))
    return tile


# --------------------------------------------------------------------------- #
# Wrapper
# --------------------------------------------------------------------------- #
def ffn_residual_block(x, prepped, *, tile_rows=512):
    """x: (B, S, D) float32.  prepped: output of prepare_params()."""
    B, S, D = x.shape
    assert D == prepped["D"], "input feature dim does not match params"
    H, Dp, Hp = prepped["H"], prepped["Dp"], prepped["Hp"]
    N = B * S

    vmem_limit = _vmem_limit_bytes()
    tile = _choose_tile(N, Dp, Hp, tile_rows, vmem_limit)
    grid = (_cdiv(N, tile),)   # ragged last row block: OOB rows discarded on writeback

    x2 = x.reshape(N, D)
    if x2.dtype != jnp.float32:
        x2 = x2.astype(jnp.float32)
    if Dp != D:
        x2 = jnp.pad(x2, ((0, 0), (0, Dp - D)))   # lane-dense feature dim

    def inv_spec(shape):
        # Grid-invariant operand: constant block index -> fetched once, stays resident.
        return pl.BlockSpec(shape, lambda i: (0, 0))

    out = pl.pallas_call(
        _make_kernel(H, Hp),
        out_shape=jax.ShapeDtypeStruct((N, Dp), x.dtype),
        grid_spec=pltpu.PrefetchScalarGridSpec(
            num_scalar_prefetch=0,
            grid=grid,
            in_specs=[
                pl.BlockSpec((tile, Dp), lambda i: (i, 0)),   # x rows
                inv_spec((Dp, Hp)),                           # w1 (bf16)
                inv_spec((1, Hp)),                            # b1
                inv_spec((1, Hp)),                            # gamma
                inv_spec((1, Hp)),                            # beta
                inv_spec((Hp, Dp)),                           # w2 (bf16)
                inv_spec((1, Dp)),                            # b2
            ],
            out_specs=pl.BlockSpec((tile, Dp), lambda i: (i, 0)),
        ),
        compiler_params=pltpu.CompilerParams(
            dimension_semantics=("parallel",),
            vmem_limit_bytes=vmem_limit,
        ),
    )(x2, prepped["w1"], prepped["b1"], prepped["gamma"], prepped["beta"],
      prepped["w2"], prepped["b2"])

    if Dp != D:
        out = out[:, :D]
    return out.reshape(B, S, D)


# --------------------------------------------------------------------------- #
# Params / reference / demo
# --------------------------------------------------------------------------- #
def init_params(key, dim, expansion_multiplier=1):
    """Deterministic synthetic params (shapes match the torch module)."""
    hidden = dim * expansion_multiplier
    k1, k2, k3, k4 = jax.random.split(key, 4)
    # Linear weights stored pre-transposed: (in_features, out_features).
    w1 = jax.random.normal(k1, (dim, hidden), jnp.float32) / jnp.sqrt(dim)
    b1 = jax.random.normal(k2, (hidden,), jnp.float32) * 0.01
    gamma = jnp.ones((hidden,), jnp.float32)
    beta = jnp.zeros((hidden,), jnp.float32)
    w2 = jax.random.normal(k3, (hidden, dim), jnp.float32) / jnp.sqrt(hidden)
    b2 = jax.random.normal(k4, (dim,), jnp.float32) * 0.01
    return {"w1": w1, "b1": b1, "gamma": gamma, "beta": beta, "w2": w2, "b2": b2}


def _reference(x, p):
    """Pure-JAX reference mirroring the kernel's bf16-operand / f32-accum numerics."""
    h = jnp.dot(x.astype(jnp.bfloat16), p["w1"].astype(jnp.bfloat16),
                preferred_element_type=jnp.float32) + p["b1"]
    h = jnp.maximum(h, 0.0)
    mean = jnp.mean(h, axis=-1, keepdims=True)
    var = jnp.mean((h - mean) ** 2, axis=-1, keepdims=True)
    hn = (h - mean) * jax.lax.rsqrt(var + LN_EPS) * p["gamma"] + p["beta"]
    y = jnp.dot(hn.astype(jnp.bfloat16), p["w2"].astype(jnp.bfloat16),
                preferred_element_type=jnp.float32) + p["b2"]
    return x + y


if __name__ == "__main__":
    B, S, D = 2, 8, 32
    expansion = 2

    key = jax.random.PRNGKey(0)
    kx, kp = jax.random.split(key)
    x = jax.random.normal(kx, (B, S, D), jnp.float32)
    params = init_params(kp, D, expansion)
    prepped = prepare_params(params)   # one-time bf16 convert + lane padding

    out = ffn_residual_block(x, prepped)
    out = jax.block_until_ready(out)

    ref = _reference(x, params)
    assert out.shape == x.shape
    # bf16 MXU operands => loosened tolerance vs pure-f32 math.
    assert jnp.allclose(out, ref, atol=1e-2, rtol=1e-2), "mismatch vs reference"

    print("KERNEL_OK")
</pallas_src>

<mosaic_0001>
module attributes {stable_mosaic.version = 11 : i64} {
  func.func @kernel(%arg0: i32, %arg1: memref<8x128xf32, #tpu.memory_space<vmem>>, %arg2: memref<128x128xbf16, #tpu.memory_space<vmem>>, %arg3: memref<1x128xf32, #tpu.memory_space<vmem>>, %arg4: memref<1x128xf32, #tpu.memory_space<vmem>>, %arg5: memref<1x128xf32, #tpu.memory_space<vmem>>, %arg6: memref<128x128xbf16, #tpu.memory_space<vmem>>, %arg7: memref<1x128xf32, #tpu.memory_space<vmem>>, %arg8: memref<8x128xf32, #tpu.memory_space<vmem>>) attributes {dimension_semantics = [#tpu.dimension_semantics<parallel>], iteration_bounds = array<i64: 2>, scalar_prefetch = 0 : i64, scratch_operands = 0 : i64, tpu.core_type = #tpu.core_type<tc>, window_params = [{transform_indices = @transform_0, window_bounds = array<i64: 8, 128>}, {pipeline_mode = #tpu.pipeline_mode<synchronous>, transform_indices = @transform_1, window_bounds = array<i64: 128, 128>}, {pipeline_mode = #tpu.pipeline_mode<synchronous>, transform_indices = @transform_2, window_bounds = array<i64: 1, 128>}, {pipeline_mode = #tpu.pipeline_mode<synchronous>, transform_indices = @transform_3, window_bounds = array<i64: 1, 128>}, {pipeline_mode = #tpu.pipeline_mode<synchronous>, transform_indices = @transform_4, window_bounds = array<i64: 1, 128>}, {pipeline_mode = #tpu.pipeline_mode<synchronous>, transform_indices = @transform_5, window_bounds = array<i64: 128, 128>}, {pipeline_mode = #tpu.pipeline_mode<synchronous>, transform_indices = @transform_6, window_bounds = array<i64: 1, 128>}, {transform_indices = @transform_7, window_bounds = array<i64: 8, 128>}]} {
    %c0 = arith.constant 0 : index
    %c0_0 = arith.constant 0 : index
    %0 = vector.load %arg1[%c0, %c0_0] : memref<8x128xf32, #tpu.memory_space<vmem>>, vector<8x128xf32>
    %1 = arith.truncf %0 : vector<8x128xf32> to vector<8x128xbf16>
    %c0_1 = arith.constant 0 : index
    %c0_2 = arith.constant 0 : index
    %2 = vector.load %arg2[%c0_1, %c0_2] : memref<128x128xbf16, #tpu.memory_space<vmem>>, vector<128x128xbf16>
    %cst = arith.constant dense<0.000000e+00> : vector<8x128xf32>
    %3 = tpu.matmul %1, %2, %cst {dimension_numbers = #tpu.dot_dimension_numbers<[1], [0], [0], [1], [0, 0, 1, 1], [], []>} : vector<8x128xbf16>, vector<128x128xbf16>, vector<8x128xf32> -> vector<8x128xf32>
    %c0_3 = arith.constant 0 : index
    %c0_4 = arith.constant 0 : index
    %4 = vector.load %arg3[%c0_3, %c0_4] : memref<1x128xf32, #tpu.memory_space<vmem>>, vector<1x128xf32>
    %5 = vector.broadcast %4 : vector<1x128xf32> to vector<8x128xf32>
    %6 = arith.addf %3, %5 : vector<8x128xf32>
    %cst_5 = arith.constant 0.000000e+00 : f32
    %7 = vector.broadcast %cst_5 : f32 to vector<8x128xf32>
    %8 = arith.maximumf %6, %7 : vector<8x128xf32>
    %cst_6 = arith.constant dense<0.000000e+00> : vector<8xf32>
    %9 = vector.multi_reduction <add>, %8, %cst_6 [1] : vector<8x128xf32> to vector<8xf32>
    %10 = vector.shape_cast %9 : vector<8xf32> to vector<8x1xf32>
    %cst_7 = arith.constant 1.562500e-02 : f32
    %11 = vector.broadcast %cst_7 : f32 to vector<8x1xf32>
    %12 = arith.mulf %10, %11 : vector<8x1xf32>
    %13 = vector.broadcast %12 : vector<8x1xf32> to vector<8x128xf32>
    %14 = arith.subf %8, %13 : vector<8x128xf32>
    %15 = tpu.iota {dimensions = array<i32: 1>} : vector<1x128xi32>
    %c64_i32 = arith.constant 64 : i32
    %16 = vector.broadcast %c64_i32 : i32 to vector<1x128xi32>
    %17 = arith.cmpi slt, %15, %16 : vector<1x128xi32>
    %cst_8 = arith.constant 0.000000e+00 : f32
    %18 = vector.shape_cast %17 : vector<1x128xi1> to vector<1x128xi1>
    %19 = vector.broadcast %18 : vector<1x128xi1> to vector<8x128xi1>
    %20 = vector.broadcast %cst_8 : f32 to vector<8x128xf32>
    %21 = arith.select %19, %14, %20 : vector<8x128xi1>, vector<8x128xf32>
    %22 = arith.mulf %21, %21 : vector<8x128xf32>
    %cst_9 = arith.constant dense<0.000000e+00> : vector<8xf32>
    %23 = vector.multi_reduction <add>, %22, %cst_9 [1] : vector<8x128xf32> to vector<8xf32>
    %24 = vector.shape_cast %23 : vector<8xf32> to vector<8x1xf32>
    %cst_10 = arith.constant 1.562500e-02 : f32
    %25 = vector.broadcast %cst_10 : f32 to vector<8x1xf32>
    %26 = arith.mulf %24, %25 : vector<8x1xf32>
    %c0_11 = arith.constant 0 : index
    %c0_12 = arith.constant 0 : index
    %27 = vector.load %arg4[%c0_11, %c0_12] : memref<1x128xf32, #tpu.memory_space<vmem>>, vector<1x128xf32>
    %cst_13 = arith.constant 9.99999974E-6 : f32
    %28 = vector.broadcast %cst_13 : f32 to vector<8x1xf32>
    %29 = arith.addf %26, %28 : vector<8x1xf32>
    %30 = math.rsqrt %29 : vector<8x1xf32>
    %31 = vector.broadcast %27 : vector<1x128xf32> to vector<8x128xf32>
    %32 = vector.broadcast %30 : vector<8x1xf32> to vector<8x128xf32>
    %33 = arith.mulf %31, %32 : vector<8x128xf32>
    %34 = arith.mulf %21, %33 : vector<8x128xf32>
    %c0_14 = arith.constant 0 : index
    %c0_15 = arith.constant 0 : index
    %35 = vector.load %arg5[%c0_14, %c0_15] : memref<1x128xf32, #tpu.memory_space<vmem>>, vector<1x128xf32>
    %36 = vector.broadcast %35 : vector<1x128xf32> to vector<8x128xf32>
    %37 = arith.addf %34, %36 : vector<8x128xf32>
    %38 = arith.truncf %37 : vector<8x128xf32> to vector<8x128xbf16>
    %c0_16 = arith.constant 0 : index
    %c0_17 = arith.constant 0 : index
    %39 = vector.load %arg6[%c0_16, %c0_17] : memref<128x128xbf16, #tpu.memory_space<vmem>>, vector<128x128xbf16>
    %cst_18 = arith.constant dense<0.000000e+00> : vector<8x128xf32>
    %40 = tpu.matmul %38, %39, %cst_18 {dimension_numbers = #tpu.dot_dimension_numbers<[1], [0], [0], [1], [0, 0, 1, 1], [], []>} : vector<8x128xbf16>, vector<128x128xbf16>, vector<8x128xf32> -> vector<8x128xf32>
    %c0_19 = arith.constant 0 : index
    %c0_20 = arith.constant 0 : index
    %41 = vector.load %arg7[%c0_19, %c0_20] : memref<1x128xf32, #tpu.memory_space<vmem>>, vector<1x128xf32>
    %42 = vector.broadcast %41 : vector<1x128xf32> to vector<8x128xf32>
    %43 = arith.addf %40, %42 : vector<8x128xf32>
    %44 = arith.addf %0, %43 : vector<8x128xf32>
    %c0_21 = arith.constant 0 : index
    %c0_22 = arith.constant 0 : index
    %45 = vector.load %arg8[%c0_21, %c0_22] : memref<8x128xf32, #tpu.memory_space<vmem>>, vector<8x128xf32>
    tpu.vector_store %arg8[%c0_21, %c0_22], %44 {strides = array<i32>} : memref<8x128xf32, #tpu.memory_space<vmem>>, vector<8x128xf32>,
    return
  }
  func.func @transform_0(%arg0: i32) -> (i32, i32) {
    %c0_i32 = arith.constant 0 : i32
    %c0_i32_0 = arith.constant 0 : i32
    return %arg0, %c0_i32 : i32, i32
  }
  func.func @transform_1(%arg0: i32) -> (i32, i32) {
    %c0_i32 = arith.constant 0 : i32
    %c0_i32_0 = arith.constant 0 : i32
    %c0_i32_1 = arith.constant 0 : i32
    return %c0_i32, %c0_i32_0 : i32, i32
  }
  func.func @transform_2(%arg0: i32) -> (i32, i32) {
    %c0_i32 = arith.constant 0 : i32
    %c0_i32_0 = arith.constant 0 : i32
    %c0_i32_1 = arith.constant 0 : i32
    return %c0_i32, %c0_i32_0 : i32, i32
  }
  func.func @transform_3(%arg0: i32) -> (i32, i32) {
    %c0_i32 = arith.constant 0 : i32
    %c0_i32_0 = arith.constant 0 : i32
    %c0_i32_1 = arith.constant 0 : i32
    return %c0_i32, %c0_i32_0 : i32, i32
  }
  func.func @transform_4(%arg0: i32) -> (i32, i32) {
    %c0_i32 = arith.constant 0 : i32
    %c0_i32_0 = arith.constant 0 : i32
    %c0_i32_1 = arith.constant 0 : i32
    return %c0_i32, %c0_i32_0 : i32, i32
  }
  func.func @transform_5(%arg0: i32) -> (i32, i32) {
    %c0_i32 = arith.constant 0 : i32
    %c0_i32_0 = arith.constant 0 : i32
    %c0_i32_1 = arith.constant 0 : i32
    return %c0_i32, %c0_i32_0 : i32, i32
  }
  func.func @transform_6(%arg0: i32) -> (i32, i32) {
    %c0_i32 = arith.constant 0 : i32
    %c0_i32_0 = arith.constant 0 : i32
    %c0_i32_1 = arith.constant 0 : i32
    return %c0_i32, %c0_i32_0 : i32, i32
  }
  func.func @transform_7(%arg0: i32) -> (i32, i32) {
    %c0_i32 = arith.constant 0 : i32
    %c0_i32_0 = arith.constant 0 : i32
    return %arg0, %c0_i32 : i32, i32
  }
}

</mosaic_0001>

<llo_original>
// kernel: tpu_custom_call.1
$region0: #{tpu_custom_call.1}
  #allocation0 [shape = 'u32[]', space=smem, size = 0x4, offset = 0x4, fixed_abs, tag = 'smem constant byte address 0x4 - core index']
  #allocation1 [shape = 'u32[144,128]{1,0:T(1,128)}', space=vmem, size = 0x12000, scoped, tag = 'internal scratch']
  %s0 = inlined_call_operand.hbm [shape: f32[16,128], index: 0, kind: input, shape index: {}]
  %s1 = inlined_call_operand.hbm [shape: bf16[128,128], index: 1, kind: input, shape index: {}]
  %s2 = inlined_call_operand.vmem [shape: f32[1,128], index: 2, kind: input, shape index: {}]
  %s3 = inlined_call_operand.vmem [shape: f32[1,128], index: 3, kind: input, shape index: {}]
  %s4 = inlined_call_operand.vmem [shape: f32[1,128], index: 4, kind: input, shape index: {}]
  %s5 = inlined_call_operand.hbm [shape: bf16[128,128], index: 5, kind: input, shape index: {}]
  %s6 = inlined_call_operand.vmem [shape: f32[1,128], index: 6, kind: input, shape index: {}]
  %s7 = inlined_call_operand.hbm [shape: f32[16,128], index: 7, kind: output, shape index: {}]
  %s8 = sld [smem:[#allocation0]]
  $region73: #{tpu_custom_call.1} parent=0
    _
  %s10 = ssub.s32 1, %s8
  %s11 = scalar_select 0, %s10, %s8
  $region1: #{tpu_custom_call.1} parent=0
    #allocation2 [shape = 'u8[8192]{0}', space=vmem, size = 0x2000, scoped, tag = 'input window, operand 0']
    #allocation3 [shape = 's32[2]{0}', space=sflag, size = 0x8, scoped, tag = 'scoped memory for tpu_custom_call.1']
    #allocation4 [shape = 's32[2]{0}', space=sflag, size = 0x8, scoped, tag = 'scoped memory for tpu_custom_call.1']
    #allocation5 [shape = 'u8[32768]{0}', space=vmem, size = 0x8000, scoped, tag = 'input window, operand 1, single buffered']
    #allocation6 [shape = 's32[1]{0}', space=sflag, size = 0x4, scoped, tag = 'scoped memory for tpu_custom_call.1']
    #allocation7 [shape = 'u8[32768]{0}', space=vmem, size = 0x8000, scoped, tag = 'input window, operand 5, single buffered']
    #allocation8 [shape = 'u8[8192]{0}', space=vmem, size = 0x2000, scoped, tag = 'output window, operand 0']
    %12 = vsyncpa [#allocation3], 0
    %s13 = scalar_lea.sflag [#allocation3], 1
    %14 = vsyncpa %s13, 0
    %15 = vsyncpa [#allocation6], 0
    %16 = vsyncpa [#allocation4], 0
    %s17 = scalar_lea.sflag [#allocation4], 1
    %18 = vsyncpa %s17, 0
    loop: start=0, step=1, limit=4
    $region2: #{tpu_custom_call.1} parent=1 // loop_pre_header
      _
    $region3: #{tpu_custom_call.1} parent=1 // loop_header
      %s20 = sphi 0, %s24
      %p21 = scmp.ge.s32.totalorder %s20, 4
      %s30 = sphi 0, %s32
      %s33 = sphi 0, %s30
      %s34 = sphi 0, %s33
      %s50 = sphi 0, %s34
      %s54 = sphi 0, %s54
      %s56 = sphi 0, %s54
      %s57 = sphi 0, %s56
      %s71 = sphi 0, %s57
      %s75 = sphi 0, %s75
      %s77 = sphi 0, %s75
      %s78 = sphi 0, %s77
      %s92 = sphi 0, %s78
      %s96 = sphi 0, %s96
      %s98 = sphi 0, %s96
      %s99 = sphi 0, %s98
      %s113 = sphi 0, %s99
      %s117 = sphi 0, %s117
      %s119 = sphi 0, %s117
      %s120 = sphi 0, %s119
      %s134 = sphi 0, %s120
      %s138 = sphi 0, %s138
      %s140 = sphi 0, %s138
      %s141 = sphi 0, %s140
      %s155 = sphi 0, %s141
      %s159 = sphi 0, %s159
      %s161 = sphi 0, %s159
      %s162 = sphi 0, %s161
      %s176 = sphi 0, %s162
      %s182 = sphi 0, %s184
      %s185 = sphi 0, %s182
      %s186 = sphi 0, %s185
      %s202 = sphi 0, %s186
    $region4: #{tpu_custom_call.1} parent=1 // loop_header_branch
      %23 = sbr.rel (%p21) target = $region8
    $region5: #{tpu_custom_call.1} parent=1 // loop_body
      %s25 = ssub.s32 %s20, 1
      %s26 = ssub.s32 %s20, 2
      %s27 = sadd.s32 %s20, 1
      %s28 = ssub.s32 %s20, %s27
      %p29 = scmp.eq.s32.totalorder %s28, 0
      %s31 = sadd.s32 %s30, 1
      %s32 = scalar_select %p29, %s30, %s31
      %p35 = pneg %p29
      %p36 = scmp.eq.s32.totalorder %s20, 1
      %p37 = por %p35, %p36
      %p38 = scmp.ne.s32.totalorder %s30, %s33
      %p39 = scmp.eq.s32.totalorder %s20, 0
      %p40 = por %p38, %p39
      %p41 = scmp.ne.s32.totalorder %s30, %s33
      %p42 = scmp.eq.s32.totalorder %s25, 1
      %p43 = por %p41, %p42
      %p44 = scmp.ne.s32.totalorder %s33, %s34
      %p45 = scmp.eq.s32.totalorder %s25, 0
      %p46 = por %p44, %p45
      %p47 = scmp.ne.s32.totalorder %s33, %s34
      %p48 = scmp.eq.s32.totalorder %s26, 1
      %p49 = por %p47, %p48
      %p51 = scmp.ne.s32.totalorder %s34, %s50
      %p52 = scmp.eq.s32.totalorder %s26, 0
      %p53 = por %p51, %p52
      %s55 = sadd.s32 %s54, 1
      %p58 = scmp.eq.s32.totalorder %s20, 1
      %p59 = scmp.ne.s32.totalorder %s54, %s56
      %p60 = scmp.eq.s32.totalorder %s20, 0
      %p61 = por %p59, %p60
      %p62 = scmp.ne.s32.totalorder %s54, %s56
      %p63 = scmp.eq.s32.totalorder %s25, 1
      %p64 = por %p62, %p63
      %p65 = scmp.ne.s32.totalorder %s56, %s57
      %p66 = scmp.eq.s32.totalorder %s25, 0
      %p67 = por %p65, %p66
      %p68 = scmp.ne.s32.totalorder %s56, %s57
      %p69 = scmp.eq.s32.totalorder %s26, 1
      %p70 = por %p68, %p69
      %p72 = scmp.ne.s32.totalorder %s57, %s71
      %p73 = scmp.eq.s32.totalorder %s26, 0
      %p74 = por %p72, %p73
      %s76 = sadd.s32 %s75, 1
      %p79 = scmp.eq.s32.totalorder %s20, 1
      %p80 = scmp.ne.s32.totalorder %s75, %s77
      %p81 = scmp.eq.s32.totalorder %s20, 0
      %p82 = por %p80, %p81
      %p83 = scmp.ne.s32.totalorder %s75, %s77
      %p84 = scmp.eq.s32.totalorder %s25, 1
      %p85 = por %p83, %p84
      %p86 = scmp.ne.s32.totalorder %s77, %s78
      %p87 = scmp.eq.s32.totalorder %s25, 0
      %p88 = por %p86, %p87
      %p89 = scmp.ne.s32.totalorder %s77, %s78
      %p90 = scmp.eq.s32.totalorder %s26, 1
      %p91 = por %p89, %p90
      %p93 = scmp.ne.s32.totalorder %s78, %s92
      %p94 = scmp.eq.s32.totalorder %s26, 0
      %p95 = por %p93, %p94
      %s97 = sadd.s32 %s96, 1
      %p100 = scmp.eq.s32.totalorder %s20, 1
      %p101 = scmp.ne.s32.totalorder %s96, %s98
      %p102 = scmp.eq.s32.totalorder %s20, 0
      %p103 = por %p101, %p102
      %p104 = scmp.ne.s32.totalorder %s96, %s98
      %p105 = scmp.eq.s32.totalorder %s25, 1
      %p106 = por %p104, %p105
      %p107 = scmp.ne.s32.totalorder %s98, %s99
      %p108 = scmp.eq.s32.totalorder %s25, 0
      %p109 = por %p107, %p108
      %p110 = scmp.ne.s32.totalorder %s98, %s99
      %p111 = scmp.eq.s32.totalorder %s26, 1
      %p112 = por %p110, %p111
      %p114 = scmp.ne.s32.totalorder %s99, %s113
      %p115 = scmp.eq.s32.totalorder %s26, 0
      %p116 = por %p114, %p115
      %s118 = sadd.s32 %s117, 1
      %p121 = scmp.eq.s32.totalorder %s20, 1
      %p122 = scmp.ne.s32.totalorder %s117, %s119
      %p123 = scmp.eq.s32.totalorder %s20, 0
      %p124 = por %p122, %p123
      %p125 = scmp.ne.s32.totalorder %s117, %s119
      %p126 = scmp.eq.s32.totalorder %s25, 1
      %p127 = por %p125, %p126
      %p128 = scmp.ne.s32.totalorder %s119, %s120
      %p129 = scmp.eq.s32.totalorder %s25, 0
      %p130 = por %p128, %p129
      %p131 = scmp.ne.s32.totalorder %s119, %s120
      %p132 = scmp.eq.s32.totalorder %s26, 1
      %p133 = por %p131, %p132
      %p135 = scmp.ne.s32.totalorder %s120, %s134
      %p136 = scmp.eq.s32.totalorder %s26, 0
      %p137 = por %p135, %p136
      %s139 = sadd.s32 %s138, 1
      %p142 = scmp.eq.s32.totalorder %s20, 1
      %p143 = scmp.ne.s32.totalorder %s138, %s140
      %p144 = scmp.eq.s32.totalorder %s20, 0
      %p145 = por %p143, %p144
      %p146 = scmp.ne.s32.totalorder %s138, %s140
      %p147 = scmp.eq.s32.totalorder %s25, 1
      %p148 = por %p146, %p147
      %p149 = scmp.ne.s32.totalorder %s140, %s141
      %p150 = scmp.eq.s32.totalorder %s25, 0
      %p151 = por %p149, %p150
      %p152 = scmp.ne.s32.totalorder %s140, %s141
      %p153 = scmp.eq.s32.totalorder %s26, 1
      %p154 = por %p152, %p153
      %p156 = scmp.ne.s32.totalorder %s141, %s155
      %p157 = scmp.eq.s32.totalorder %s26, 0
      %p158 = por %p156, %p157
      %s160 = sadd.s32 %s159, 1
      %p163 = scmp.eq.s32.totalorder %s20, 1
      %p164 = scmp.ne.s32.totalorder %s159, %s161
      %p165 = scmp.eq.s32.totalorder %s20, 0
      %p166 = por %p164, %p165
      %p167 = scmp.ne.s32.totalorder %s159, %s161
      %p168 = scmp.eq.s32.totalorder %s25, 1
      %p169 = por %p167, %p168
      %p170 = scmp.ne.s32.totalorder %s161, %s162
      %p171 = scmp.eq.s32.totalorder %s25, 0
      %p172 = por %p170, %p171
      %p173 = scmp.ne.s32.totalorder %s161, %s162
      %p174 = scmp.eq.s32.totalorder %s26, 1
      %p175 = por %p173, %p174
      %p177 = scmp.ne.s32.totalorder %s162, %s176
      %p178 = scmp.eq.s32.totalorder %s26, 0
      %p179 = por %p177, %p178
      %s180 = ssub.s32 %s20, %s27
      %p181 = scmp.eq.s32.totalorder %s180, 0
      %s183 = sadd.s32 %s182, 1
      %s184 = scalar_select %p181, %s182, %s183
      %p187 = pneg %p181
      %p188 = scmp.eq.s32.totalorder %s20, 1
      %p189 = por %p187, %p188
      %p190 = scmp.ne.s32.totalorder %s182, %s185
      %p191 = scmp.eq.s32.totalorder %s20, 0
      %p192 = por %p190, %p191
      %p193 = scmp.ne.s32.totalorder %s182, %s185
      %p194 = scmp.eq.s32.totalorder %s25, 1
      %p195 = por %p193, %p194
      %p196 = scmp.ne.s32.totalorder %s185, %s186
      %p197 = scmp.eq.s32.totalorder %s25, 0
      %p198 = por %p196, %p197
      %p199 = scmp.ne.s32.totalorder %s185, %s186
      %p200 = scmp.eq.s32.totalorder %s26, 1
      %p201 = por %p199, %p200
      %p203 = scmp.ne.s32.totalorder %s186, %s202
      %p204 = scmp.eq.s32.totalorder %s26, 0
      %p205 = por %p203, %p204
      %p206 = scmp.le.s32.totalorder 1, %s20
      %p207 = scmp.lt.s32.totalorder %s20, 3
      %p208 = pnand %p206, %p207
      %p209 = pneg %p208
      // Predicated region
      $region9: #{tpu_custom_call.1} parent=5 // pred_check
        _
      $region10: #{tpu_custom_call.1} parent=5 // pred_check_branch
        %211 = sbr.rel (%p208) target = $region12
      $region11: #{tpu_custom_call.1} parent=5 // pred_region
        %s212 = ssub.s32 %s20, 1
        // Predicated region
        $region13: #{tpu_custom_call.1} parent=11 // pred_check
          %p213 = pneg %p67
        $region14: #{tpu_custom_call.1} parent=11 // pred_check_branch
          %215 = sbr.rel (%p213) target = $region16
        $region15: #{tpu_custom_call.1} parent=11 // pred_region
          %s217 = ssub.s32 1024, 1024
          %218 = vsyncadd [#allocation6], %s217
          %s219 = sshll.u32 [#allocation5], 4
          %s220 = int_to_ptr.vmem [resolvable:$true] %s219
          %225 = dma.hbm_to_vmem [thread:$0]  %s1, 1024, %s220, [#allocation6], 64, 64, 4
        $region16: #{tpu_custom_call.1} parent=11 // pred_fallthru
          _
        // Predicated region
        $region17: #{tpu_custom_call.1} parent=11 // pred_check
          %p226 = pneg %p88
        $region18: #{tpu_custom_call.1} parent=11 // pred_check_branch
          %228 = sbr.rel (%p226) target = $region20
        $region19: #{tpu_custom_call.1} parent=11 // pred_region
          _
        $region20: #{tpu_custom_call.1} parent=11 // pred_fallthru
          _
        // Predicated region
        $region21: #{tpu_custom_call.1} parent=11 // pred_check
          %p229 = pneg %p109
        $region22: #{tpu_custom_call.1} parent=11 // pred_check_branch
          %231 = sbr.rel (%p229) target = $region24
        $region23: #{tpu_custom_call.1} parent=11 // pred_region
          _
        $region24: #{tpu_custom_call.1} parent=11 // pred_fallthru
          _
        // Predicated region
        $region25: #{tpu_custom_call.1} parent=11 // pred_check
          %p232 = pneg %p130
        $region26: #{tpu_custom_call.1} parent=11 // pred_check_branch
          %234 = sbr.rel (%p232) target = $region28
        $region27: #{tpu_custom_call.1} parent=11 // pred_region
          _
        $region28: #{tpu_custom_call.1} parent=11 // pred_fallthru
          _
        // Predicated region
        $region29: #{tpu_custom_call.1} parent=11 // pred_check
          %p235 = pneg %p151
        $region30: #{tpu_custom_call.1} parent=11 // pred_check_branch
          %237 = sbr.rel (%p235) target = $region32
        $region31: #{tpu_custom_call.1} parent=11 // pred_region
          %s239 = ssub.s32 1024, 1024
          %240 = vsyncadd [#allocation6], %s239
          %s241 = sshll.u32 [#allocation7], 4
          %s242 = int_to_ptr.vmem [resolvable:$true] %s241
          %247 = dma.hbm_to_vmem [thread:$0]  %s5, 1024, %s242, [#allocation6], 64, 64, 4
        $region32: #{tpu_custom_call.1} parent=11 // pred_fallthru
          _
        // Predicated region
        $region33: #{tpu_custom_call.1} parent=11 // pred_check
          %p248 = pneg %p172
        $region34: #{tpu_custom_call.1} parent=11 // pred_check_branch
          %250 = sbr.rel (%p248) target = $region36
        $region35: #{tpu_custom_call.1} parent=11 // pred_region
          _
        $region36: #{tpu_custom_call.1} parent=11 // pred_fallthru
          _
      $region12: #{tpu_custom_call.1} parent=5 // pred_fallthru
        _
      %p251 = scmp.lt.s32.totalorder %s20, 2
      // Predicated region
      $region37: #{tpu_custom_call.1} parent=5 // pred_check
        %p252 = pneg %p251
      $region38: #{tpu_custom_call.1} parent=5 // pred_check_branch
        %254 = sbr.rel (%p252) target = $region40
      $region39: #{tpu_custom_call.1} parent=5 // pred_region
        // Predicated region
        $region41: #{tpu_custom_call.1} parent=39 // pred_check
          %p255 = pneg %p40
        $region42: #{tpu_custom_call.1} parent=39 // pred_check_branch
          %257 = sbr.rel (%p255) target = $region44
        $region43: #{tpu_custom_call.1} parent=39 // pred_region
          %s258 = sand.u32 %s30, 1
          %s259 = scalar_lea.sflag [#allocation3], %s258
          %s260 = sand.u32 %s30, 1
          %s261 = smul.addr %s260, 8
          %s262 = scalar_lea.vmem [#allocation2], %s261
          %s264 = ssub.s32 128, 128
          %265 = vsyncadd %s259, %s264
          %s266 = smul.addr %s20, 128
          %s267 = scalar_lea.hbm %s0, %s266
          %s269 = sshll.u32 %s262, 4
          %s270 = int_to_ptr.vmem [resolvable:$true] %s269
          %272 = dma.hbm_to_vmem [thread:$0]  %s267, 128, %s270, %s259
        $region44: #{tpu_custom_call.1} parent=39 // pred_fallthru
          _
      $region40: #{tpu_custom_call.1} parent=5 // pred_fallthru
        _
      %p273 = scmp.le.s32.totalorder 1, %s20
      %p274 = scmp.lt.s32.totalorder %s20, 3
      %p275 = pnand %p273, %p274
      %p276 = pneg %p275
      // Predicated region
      $region45: #{tpu_custom_call.1} parent=5 // pred_check
        _
      $region46: #{tpu_custom_call.1} parent=5 // pred_check_branch
        %278 = sbr.rel (%p275) target = $region48
      $region47: #{tpu_custom_call.1} parent=5 // pred_region
        %s279 = ssub.s32 %s20, 1
        %s280 = sand.u32 %s33, 1
        %s281 = scalar_lea.sflag [#allocation3], %s280
        %s282 = sand.u32 %s33, 1
        %s283 = smul.addr %s282, 8
        %s284 = scalar_lea.vmem [#allocation2], %s283
        // Predicated region
        $region49: #{tpu_custom_call.1} parent=47 // pred_check
          %p285 = pneg %p46
        $region50: #{tpu_custom_call.1} parent=47 // pred_check_branch
          %287 = sbr.rel (%p285) target = $region52
        $region51: #{tpu_custom_call.1} parent=47 // pred_region
          %288 = dma.done %s281, 128
        $region52: #{tpu_custom_call.1} parent=47 // pred_fallthru
          _
        // Predicated region
        $region53: #{tpu_custom_call.1} parent=47 // pred_check
          %p289 = pneg %p67
        $region54: #{tpu_custom_call.1} parent=47 // pred_check_branch
          %291 = sbr.rel (%p289) target = $region56
        $region55: #{tpu_custom_call.1} parent=47 // pred_region
          %292 = dma.done [#allocation6], 1024
        $region56: #{tpu_custom_call.1} parent=47 // pred_fallthru
          _
        // Predicated region
        $region57: #{tpu_custom_call.1} parent=47 // pred_check
          %p293 = pneg %p151
        $region58: #{tpu_custom_call.1} parent=47 // pred_check_branch
          %295 = sbr.rel (%p293) target = $region60
        $region59: #{tpu_custom_call.1} parent=47 // pred_region
          %296 = dma.done [#allocation6], 1024
        $region60: #{tpu_custom_call.1} parent=47 // pred_fallthru
          _
        %s297 = sand.u32 %s33, 1
        %s298 = scalar_lea.sflag [#allocation3], %s297
        %s299 = sand.u32 %s33, 1
        %s300 = smul.addr %s299, 8
        %s301 = scalar_lea.vmem [#allocation2], %s300
        %p302 = pneg %p46
        %p303 = pneg %p43
        %p304 = pneg %p67
        %p305 = pneg %p64
        %p306 = pneg %p88
        %p307 = pneg %p85
        %p308 = pneg %p109
        %p309 = pneg %p106
        %p310 = pneg %p130
        %p311 = pneg %p127
        %p312 = pneg %p151
        %p313 = pneg %p148
        %p314 = pneg %p172
        %p315 = pneg %p169
        %p316 = pneg %p198
        %p317 = pneg %p195
        %s318 = sand.u32 %s185, 1
        %s319 = scalar_lea.sflag [#allocation4], %s318
        %s320 = sand.u32 %s185, 1
        %s321 = smul.addr %s320, 8
        %s322 = scalar_lea.vmem [#allocation8], %s321
        %v324 = vld [vmem:[%s284] sm:$0xff]
        %v325 = vpack.c.bf16 %v324, %v324
        %v326 = vld [vmem:[#allocation5] sm:$0xf]
        %v327 = vld [vmem:[#allocation5 + $0x4] sm:$0xf]
        %v328 = vld [vmem:[#allocation5 + $0x8] sm:$0xf]
        %v329 = vld [vmem:[#allocation5 + $0xc] sm:$0xf]
        %v330 = vld [vmem:[#allocation5 + $0x10] sm:$0xf]
        %v331 = vld [vmem:[#allocation5 + $0x14] sm:$0xf]
        %v332 = vld [vmem:[#allocation5 + $0x18] sm:$0xf]
        %v333 = vld [vmem:[#allocation5 + $0x1c] sm:$0xf]
        %v334 = vld [vmem:[#allocation5 + $0x20] sm:$0xf]
        %v335 = vld [vmem:[#allocation5 + $0x24] sm:$0xf]
        %v336 = vld [vmem:[#allocation5 + $0x28] sm:$0xf]
        %v337 = vld [vmem:[#allocation5 + $0x2c] sm:$0xf]
        %v338 = vld [vmem:[#allocation5 + $0x30] sm:$0xf]
        %v339 = vld [vmem:[#allocation5 + $0x34] sm:$0xf]
        %v340 = vld [vmem:[#allocation5 + $0x38] sm:$0xf]
        %v341 = vld [vmem:[#allocation5 + $0x3c] sm:$0xf]
        %v342 = vld [vmem:[%s2] sm:$0x1]
        %v344 = vlaneseq
        %v345 = vshrl.u32 %v344, 7
        %v346 = vsub.s32 0, %v345
        %v347 = vrot.slane %v342, %v346
        %v365 = vunpack.c.l.b16 %v326
        %v366 = vunpack.c.l.b16 %v327
        %v367 = vunpack.c.l.b16 %v328
        %v368 = vunpack.c.l.b16 %v329
        %v369 = vunpack.c.l.b16 %v330
        %v370 = vunpack.c.l.b16 %v331
        %v371 = vunpack.c.l.b16 %v332
        %v372 = vunpack.c.l.b16 %v333
        %v373 = vunpack.c.l.b16 %v334
        %v374 = vunpack.c.l.b16 %v335
        %v375 = vunpack.c.l.b16 %v336
        %v376 = vunpack.c.l.b16 %v337
        %v377 = vunpack.c.l.b16 %v338
        %v378 = vunpack.c.l.b16 %v339
        %v379 = vunpack.c.l.b16 %v340
        %v380 = vunpack.c.l.b16 %v341
        %v381 = vpack.c.b16 %v366, %v365
        %v382 = vpack.c.b16 %v368, %v367
        %v383 = vpack.c.b16 %v370, %v369
        %v384 = vpack.c.b16 %v372, %v371
        %v385 = vpack.c.b16 %v374, %v373
        %v386 = vpack.c.b16 %v376, %v375
        %v387 = vpack.c.b16 %v378, %v377
        %v388 = vpack.c.b16 %v380, %v379
        %397 = vmatprep.subr.bf16.mxu0 0
        %398 = vmatpush1.bf16.msra.mxu0 %v381
        %399 = vmatprep.subr.bf16.mxu0 0
        %400 = vmatpush1.bf16.msra.mxu0 %v382
        %401 = vmatprep.subr.bf16.mxu0 0
        %402 = vmatpush1.bf16.msra.mxu0 %v383
        %403 = vmatprep.subr.bf16.mxu0 0
        %404 = vmatpush1.bf16.msra.mxu0 %v384
        %405 = vmatprep.subr.bf16.mxu0 0
        %406 = vmatpush1.bf16.msra.mxu0 %v385
        %407 = vmatprep.subr.bf16.mxu0 0
        %408 = vmatpush1.bf16.msra.mxu0 %v386
        %409 = vmatprep.subr.bf16.mxu0 0
        %410 = vmatpush1.bf16.msra.mxu0 %v387
        %411 = vmatprep.subr.bf16.mxu0 0
        %412 = vmatpush1.bf16.msra.mxu0 %v388
        %413 = vmatprep.subr.bf16.mxu0 0
        %414 = vmatpush1.bf16.msra.mxu0 0
        %415 = vmatprep.subr.bf16.mxu0 0
        %416 = vmatpush1.bf16.msra.mxu0 0
        %417 = vmatprep.subr.bf16.mxu0 0
        %418 = vmatpush1.bf16.msra.mxu0 0
        %419 = vmatprep.subr.bf16.mxu0 0
        %420 = vmatpush1.bf16.msra.mxu0 0
        %421 = vmatprep.subr.bf16.mxu0 0
        %422 = vmatpush1.bf16.msra.mxu0 0
        %423 = vmatprep.subr.bf16.mxu0 0
        %424 = vmatpush1.bf16.msra.mxu0 0
        %425 = vmatprep.subr.bf16.mxu0 0
        %426 = vmatpush1.bf16.msra.mxu0 0
        %427 = vmatprep.subr.bf16.mxu0 0
        %428 = vmatpush1.bf16.msra.mxu0 0
        %429 = vmatprep.mubr.bf16.mxu0 0
        %430 = vmatmul.mubr.bf16.gmra.mrb[0].mxu0 %v325
        %v431 = vpop.f32.mrb[0].mxu0
        %v432 = vadd.f32 %v347, %v431
        %v433 = vpop.f32.mrb[0].mxu0
        %v434 = vpop.f32.mrb[0].mxu0
        %v435 = vpop.f32.mrb[0].mxu0
        %436 = vdwg.mxu0
        %v437 = vmax.f32 %v432, 0.0
        %438 = vadd.xlane.f32.xlu0 %v437
        %v439 = vpop.xlane.xlu0 %438
        %v440 = vmul.f32 %v439, 0.015625
        %v441 = vsub.f32 %v437, %v440
        %v442 = vlaneseq
        %v443 = vand.u32 %v442, 127
        %vm444 = vcmp.lt.s32.totalorder %v443, 64
        %v445 = vsel %vm444, 1, 0
        %vm446 = vcmp.eq.s32.totalorder %v445, 1
        %v447 = vsel %vm446, %v441, 0.0
        %v448 = vmul.f32 %v447, %v447
        %449 = vadd.xlane.f32.xlu0 %v448
        %v450 = vpop.xlane.xlu0 %449
        %v451 = vmul.f32 %v450, 0.015625
        %v452 = vld [vmem:[%s3] sm:$0x1]
        %v453 = vadd.f32 %v451, 1e-05
        %v454 = vrsqrt.pop %v453
        %v456 = vlaneseq
        %v457 = vshrl.u32 %v456, 7
        %v458 = vsub.s32 0, %v457
        %v459 = vrot.slane %v452, %v458
        %v461 = vmul.f32 %v459, %v454
        %v462 = vmul.f32 %v447, %v461
        %v463 = vld [vmem:[%s4] sm:$0x1]
        %v465 = vlaneseq
        %v466 = vshrl.u32 %v465, 7
        %v467 = vsub.s32 0, %v466
        %v468 = vrot.slane %v463, %v467
        %v470 = vadd.f32 %v462, %v468
        %v471 = vpack.c.bf16 %v470, %v470
        %v472 = vld [vmem:[#allocation7] sm:$0xf]
        %v473 = vld [vmem:[#allocation7 + $0x4] sm:$0xf]
        %v474 = vld [vmem:[#allocation7 + $0x8] sm:$0xf]
        %v475 = vld [vmem:[#allocation7 + $0xc] sm:$0xf]
        %v476 = vld [vmem:[#allocation7 + $0x10] sm:$0xf]
        %v477 = vld [vmem:[#allocation7 + $0x14] sm:$0xf]
        %v478 = vld [vmem:[#allocation7 + $0x18] sm:$0xf]
        %v479 = vld [vmem:[#allocation7 + $0x1c] sm:$0xf]
        %v480 = vld [vmem:[#allocation7 + $0x20] sm:$0xf]
        %v481 = vld [vmem:[#allocation7 + $0x24] sm:$0xf]
        %v482 = vld [vmem:[#allocation7 + $0x28] sm:$0xf]
        %v483 = vld [vmem:[#allocation7 + $0x2c] sm:$0xf]
        %v484 = vld [vmem:[#allocation7 + $0x30] sm:$0xf]
        %v485 = vld [vmem:[#allocation7 + $0x34] sm:$0xf]
        %v486 = vld [vmem:[#allocation7 + $0x38] sm:$0xf]
        %v487 = vld [vmem:[#allocation7 + $0x3c] sm:$0xf]
        %v488 = vld [vmem:[%s6] sm:$0x1]
        %v490 = vlaneseq
        %v491 = vshrl.u32 %v490, 7
        %v492 = vsub.s32 0, %v491
        %v493 = vrot.slane %v488, %v492
        %v511 = vunpack.c.l.b16 %v472
        %v512 = vunpack.c.l.b16 %v473
        %v513 = vunpack.c.l.b16 %v474
        %v514 = vunpack.c.l.b16 %v475
        %v515 = vunpack.c.l.b16 %v476
        %v516 = vunpack.c.l.b16 %v477
        %v517 = vunpack.c.l.b16 %v478
        %v518 = vunpack.c.l.b16 %v479
        %v519 = vunpack.c.l.b16 %v480
        %v520 = vunpack.c.l.b16 %v481
        %v521 = vunpack.c.l.b16 %v482
        %v522 = vunpack.c.l.b16 %v483
        %v523 = vunpack.c.l.b16 %v484
        %v524 = vunpack.c.l.b16 %v485
        %v525 = vunpack.c.l.b16 %v486
        %v526 = vunpack.c.l.b16 %v487
        %v527 = vpack.c.b16 %v512, %v511
        %v528 = vpack.c.b16 %v514, %v513
        %v529 = vpack.c.b16 %v516, %v515
        %v530 = vpack.c.b16 %v518, %v517
        %v531 = vpack.c.b16 %v520, %v519
        %v532 = vpack.c.b16 %v522, %v521
        %v533 = vpack.c.b16 %v524, %v523
        %v534 = vpack.c.b16 %v526, %v525
        %543 = vmatprep.subr.bf16.mxu0 0
        %544 = vmatpush1.bf16.msra.mxu0 %v527
        %545 = vmatprep.subr.bf16.mxu0 0
        %546 = vmatpush1.bf16.msra.mxu0 %v528
        %547 = vmatprep.subr.bf16.mxu0 0
        %548 = vmatpush1.bf16.msra.mxu0 %v529
        %549 = vmatprep.subr.bf16.mxu0 0
        %550 = vmatpush1.bf16.msra.mxu0 %v530
        %551 = vmatprep.subr.bf16.mxu0 0
        %552 = vmatpush1.bf16.msra.mxu0 %v531
        %553 = vmatprep.subr.bf16.mxu0 0
        %554 = vmatpush1.bf16.msra.mxu0 %v532
        %555 = vmatprep.subr.bf16.mxu0 0
        %556 = vmatpush1.bf16.msra.mxu0 %v533
        %557 = vmatprep.subr.bf16.mxu0 0
        %558 = vmatpush1.bf16.msra.mxu0 %v534
        %559 = vmatprep.subr.bf16.mxu0 0
        %560 = vmatpush1.bf16.msra.mxu0 0
        %561 = vmatprep.subr.bf16.mxu0 0
        %562 = vmatpush1.bf16.msra.mxu0 0
        %563 = vmatprep.subr.bf16.mxu0 0
        %564 = vmatpush1.bf16.msra.mxu0 0
        %565 = vmatprep.subr.bf16.mxu0 0
        %566 = vmatpush1.bf16.msra.mxu0 0
        %567 = vmatprep.subr.bf16.mxu0 0
        %568 = vmatpush1.bf16.msra.mxu0 0
        %569 = vmatprep.subr.bf16.mxu0 0
        %570 = vmatpush1.bf16.msra.mxu0 0
        %571 = vmatprep.subr.bf16.mxu0 0
        %572 = vmatpush1.bf16.msra.mxu0 0
        %573 = vmatprep.subr.bf16.mxu0 0
        %574 = vmatpush1.bf16.msra.mxu0 0
        %575 = vmatprep.mubr.bf16.mxu0 0
        %576 = vmatmul.mubr.bf16.gmra.mrb[0].mxu0 %v471
        %v577 = vpop.f32.mrb[0].mxu0
        %v578 = vadd.f32 %v493, %v577
        %v579 = vpop.f32.mrb[0].mxu0
        %v580 = vpop.f32.mrb[0].mxu0
        %v581 = vpop.f32.mrb[0].mxu0
        %582 = vdwg.mxu0
        %v583 = vadd.f32 %v324, %v578
        %584 = vst [vmem:[%s322] sm:$0xff] %v583
        %s585 = sand.u32 %s185, 1
        %s586 = scalar_lea.sflag [#allocation4], %s585
        %s587 = sand.u32 %s185, 1
        %s588 = smul.addr %s587, 8
        %s589 = scalar_lea.vmem [#allocation8], %s588
        // Predicated region
        $region61: #{tpu_custom_call.1} parent=47 // pred_check
          %p590 = pneg %p195
        $region62: #{tpu_custom_call.1} parent=47 // pred_check_branch
          %592 = sbr.rel (%p590) target = $region64
        $region63: #{tpu_custom_call.1} parent=47 // pred_region
          %s594 = ssub.s32 128, 128
          %595 = vsyncadd %s586, %s594
          %s596 = smul.addr %s25, 128
          %s597 = scalar_lea.hbm %s7, %s596
          %s599 = sshll.u32 %s589, 4
          %s600 = int_to_ptr.vmem [resolvable:$true] %s599
          %602 = dma.vmem_to_hbm [thread:$0]  %s600, 128, %s597, %s586
        $region64: #{tpu_custom_call.1} parent=47 // pred_fallthru
          _
      $region48: #{tpu_custom_call.1} parent=5 // pred_fallthru
        _
      %p603 = scmp.le.s32.totalorder 2, %s20
      // Predicated region
      $region65: #{tpu_custom_call.1} parent=5 // pred_check
        %p604 = pneg %p603
      $region66: #{tpu_custom_call.1} parent=5 // pred_check_branch
        %606 = sbr.rel (%p604) target = $region68
      $region67: #{tpu_custom_call.1} parent=5 // pred_region
        %s607 = ssub.s32 %s20, 2
        // Predicated region
        $region69: #{tpu_custom_call.1} parent=67 // pred_check
          %p608 = pneg %p201
        $region70: #{tpu_custom_call.1} parent=67 // pred_check_branch
          %610 = sbr.rel (%p608) target = $region72
        $region71: #{tpu_custom_call.1} parent=67 // pred_region
          %s611 = sand.u32 %s186, 1
          %s612 = scalar_lea.sflag [#allocation4], %s611
          %s613 = sand.u32 %s186, 1
          %s614 = smul.addr %s613, 8
          %s615 = scalar_lea.vmem [#allocation8], %s614
          %616 = dma.done %s612, 128
        $region72: #{tpu_custom_call.1} parent=67 // pred_fallthru
          _
      $region68: #{tpu_custom_call.1} parent=5 // pred_fallthru
        _
    $region6: #{tpu_custom_call.1} parent=1 // loop_footer
      %s24 = sadd.s32 1, %s20
    $region7: #{tpu_custom_call.1} parent=1 // loop_footer_branch
      %19 = sbr.rel target = $region3
    $region8: #{tpu_custom_call.1} parent=1 // loop_exit
      _
    %617 = vsyncpa [#allocation3], 1
    %s618 = scalar_lea.sflag [#allocation3], 1
    %619 = vsyncpa %s618, 1
    %620 = vsyncpa [#allocation6], 1
    %621 = vsyncpa [#allocation4], 1
    %s622 = scalar_lea.sflag [#allocation4], 1
    %623 = vsyncpa %s622, 1

</llo_original>
